<compile_context>
chip_gen: v7x
topology: tpu7x:2x2x1
jax: 0.10.0
libtpu: 0.0.40
codegen_flags: <defaults>
</compile_context>

<pallas_src>
import functools

import jax
import jax.numpy as jnp
from jax import lax
from jax.experimental import pallas as pl
from jax.experimental.pallas import tpu as pltpu


def lstm_kernel(x_ref, w_ih_ref, w_hh_ref, b_ref, w_fc_ref, b_fc_ref,
                out_ref, xp_scr, *, seq_len, batch, hidden):
    """Single-layer LSTM over the full sequence + final Linear on h_T.

    x_ref:    (T*B, I)    time-major input, (t, b) flattened
    w_ih_ref: (I, 4H)     fused input->gate weights (gate order i, f, g, o)
    w_hh_ref: (H, 4H)     fused hidden->gate weights
    b_ref:    (1, 4H)     combined bias (b_ih + b_hh)
    w_fc_ref: (H, Opad)   final linear weight (transposed, lane-padded to 128)
    b_fc_ref: (1, Opad)   final linear bias (lane-padded)
    out_ref:  (B, Opad)   fc(h_T), lane-dense store
    xp_scr:   (T*B, 4H)   VMEM scratch holding the precomputed input projection
    """
    T, B, H = seq_len, batch, hidden

    # ---- Input projection hoisted out of the recurrence (one big MXU dot) ----
    # (T*B, I) @ (I, 4H) + b  ->  (T*B, 4H); 4H == 128 lanes -> lane-dense.
    xp_scr[...] = (
        jnp.dot(x_ref[...], w_ih_ref[...], preferred_element_type=jnp.float32)
        + b_ref[...])

    # ---- Hoist loop-invariant loads out of the recurrence ----
    w_hh = w_hh_ref[...]                                   # (H, 4H), ~4 vregs, resident
    lane = lax.broadcasted_iota(jnp.int32, (B, 4 * H), 1)
    is_g = (lane >= 2 * H) & (lane < 3 * H)                # tanh block (g gate)

    def step(t, carry):
        h, c = carry                                       # (B, H) each, in vregs
        x_proj = xp_scr[pl.ds(t * B, B), :]                # (B, 4H) precomputed
        gates = x_proj + jnp.dot(h, w_hh, preferred_element_type=jnp.float32)
        # Two full-width EUP transcendentals + one VPU select, then static slices.
        act = jnp.where(is_g, jnp.tanh(gates), jax.nn.sigmoid(gates))
        i_g = act[:, 0 * H:1 * H]
        f_g = act[:, 1 * H:2 * H]
        g_g = act[:, 2 * H:3 * H]
        o_g = act[:, 3 * H:4 * H]
        c_new = f_g * c + i_g * g_g
        h_new = o_g * jnp.tanh(c_new)
        return (h_new, c_new)

    h0 = jnp.zeros((B, H), jnp.float32)
    c0 = jnp.zeros((B, H), jnp.float32)
    h_T, _ = lax.fori_loop(0, T, step, (h0, c0), unroll=True)

    # ---- Final Linear on the last hidden state (lane-dense output) ----
    out_ref[...] = (jnp.dot(h_T, w_fc_ref[...], preferred_element_type=jnp.float32)
                    + b_fc_ref[...])


def lstm_model_forward(x, params):
    """Equivalent of LSTMModel.forward: x (B, T, I) -> out (B, 1, O)."""
    B, T, I = x.shape
    H = params["w_hh"].shape[0]
    O = params["w_fc"].shape[1]
    O_pad = max(128, pl.cdiv(O, 128) * 128)

    # Time-major, then flatten (T, B) so the kernel sees one (T*B, I) slab for
    # the hoisted input projection.  (Layout plumbing done outside the kernel.)
    x2d = jnp.transpose(x, (1, 0, 2)).reshape(T * B, I)

    # Lane-pad the final Linear so the kernel's output store is lane-dense.
    w_fc_pad = jnp.pad(params["w_fc"], ((0, 0), (0, O_pad - O)))
    b_fc_pad = jnp.pad(params["b_fc"], ((0, 0), (0, O_pad - O)))

    kernel = functools.partial(lstm_kernel, seq_len=T, batch=B, hidden=H)
    vmem = lambda: pl.BlockSpec(memory_space=pltpu.MemorySpace.VMEM)

    # TODO(synk): at much larger T/B, stream x via a grid/BlockSpec instead of
    # keeping the full (T*B, I) slab resident (matters on v7x's 64 MiB VMEM).
    out = pl.pallas_call(
        kernel,
        out_shape=jax.ShapeDtypeStruct((B, O_pad), jnp.float32),
        in_specs=[vmem(), vmem(), vmem(), vmem(), vmem(), vmem()],
        out_specs=vmem(),
        scratch_shapes=[pltpu.VMEM((T * B, 4 * H), jnp.float32)],  # x-projection
    )(x2d, params["w_ih"], params["w_hh"], params["b"], w_fc_pad, b_fc_pad)

    return out[:, :O][:, None, :]   # drop lane padding, unsqueeze(1): (B, 1, O)


def init_params(key, input_size, hidden_size, output_size):
    """Deterministic init mirroring nn.LSTM / nn.Linear parameter shapes."""
    H, I, O = hidden_size, input_size, output_size
    ks = jax.random.split(key, 6)
    bound = 1.0 / jnp.sqrt(H)

    # PyTorch-shaped raw parameters (gate order i, f, g, o along the 4H axis).
    weight_ih = jax.random.uniform(ks[0], (4 * H, I), jnp.float32, -bound, bound)
    weight_hh = jax.random.uniform(ks[1], (4 * H, H), jnp.float32, -bound, bound)
    bias_ih = jax.random.uniform(ks[2], (4 * H,), jnp.float32, -bound, bound)
    bias_hh = jax.random.uniform(ks[3], (4 * H,), jnp.float32, -bound, bound)
    fc_w = jax.random.uniform(ks[4], (O, H), jnp.float32, -bound, bound)
    fc_b = jax.random.uniform(ks[5], (O,), jnp.float32, -bound, bound)

    # Kernel-friendly fused layouts (gate k occupies columns [k*H, (k+1)*H)).
    return {
        "w_ih": weight_ih.T,                           # (I, 4H)
        "w_hh": weight_hh.T,                           # (H, 4H)
        "b": (bias_ih + bias_hh).reshape(1, 4 * H),    # (1, 4H)
        "w_fc": fc_w.T,                                # (H, O)
        "b_fc": fc_b.reshape(1, O),                    # (1, O)
    }


def reference_forward(x, params):
    """Pure-JAX reference of the same LSTM math (for correctness check)."""
    B, T, I = x.shape
    H = params["w_hh"].shape[0]

    def cell(carry, x_t):
        h, c = carry
        gates = x_t @ params["w_ih"] + h @ params["w_hh"] + params["b"]
        i_g = jax.nn.sigmoid(gates[:, 0 * H:1 * H])
        f_g = jax.nn.sigmoid(gates[:, 1 * H:2 * H])
        g_g = jnp.tanh(gates[:, 2 * H:3 * H])
        o_g = jax.nn.sigmoid(gates[:, 3 * H:4 * H])
        c_new = f_g * c + i_g * g_g
        h_new = o_g * jnp.tanh(c_new)
        return (h_new, c_new), None

    h0 = jnp.zeros((B, H), jnp.float32)
    c0 = jnp.zeros((B, H), jnp.float32)
    (h_T, _), _ = lax.scan(cell, (h0, c0), jnp.transpose(x, (1, 0, 2)))
    out = h_T @ params["w_fc"] + params["b_fc"]
    return out[:, None, :]


if __name__ == "__main__":
    B, T, INPUT, HIDDEN, OUTPUT = 2, 8, 16, 32, 8

    key = jax.random.PRNGKey(0)
    k_param, k_x = jax.random.split(key)
    params = init_params(k_param, INPUT, HIDDEN, OUTPUT)
    x = jax.random.normal(k_x, (B, T, INPUT), jnp.float32)

    out = lstm_model_forward(x, params)
    out = jax.block_until_ready(out)

    ref = reference_forward(x, params)
    assert out.shape == (B, 1, OUTPUT), out.shape
    assert jnp.allclose(out, ref, atol=1e-5, rtol=1e-5), float(jnp.abs(out - ref).max())

    print("KERNEL_OK")
</pallas_src>

<mosaic_0001>
module attributes {stable_mosaic.version = 11 : i64} {
  func.func @lstm_kernel(%arg0: memref<16x16xf32, #tpu.memory_space<vmem>>, %arg1: memref<16x128xf32, #tpu.memory_space<vmem>>, %arg2: memref<32x128xf32, #tpu.memory_space<vmem>>, %arg3: memref<1x128xf32, #tpu.memory_space<vmem>>, %arg4: memref<32x128xf32, #tpu.memory_space<vmem>>, %arg5: memref<1x128xf32, #tpu.memory_space<vmem>>, %arg6: memref<2x128xf32, #tpu.memory_space<vmem>>, %arg7: memref<16x128xf32, #tpu.memory_space<vmem>>) attributes {dimension_semantics = [], scalar_prefetch = 0 : i64, scratch_operands = 1 : i64, tpu.core_type = #tpu.core_type<tc>} {
    %c0 = arith.constant 0 : index
    %c0_0 = arith.constant 0 : index
    %0 = vector.load %arg0[%c0, %c0_0] : memref<16x16xf32, #tpu.memory_space<vmem>>, vector<16x16xf32>
    %c0_1 = arith.constant 0 : index
    %c0_2 = arith.constant 0 : index
    %1 = vector.load %arg1[%c0_1, %c0_2] : memref<16x128xf32, #tpu.memory_space<vmem>>, vector<16x128xf32>
    %cst = arith.constant dense<0.000000e+00> : vector<16x128xf32>
    %2 = tpu.matmul %0, %1, %cst {dimension_numbers = #tpu.dot_dimension_numbers<[1], [0], [0], [1], [0, 0, 1, 1], [], []>} : vector<16x16xf32>, vector<16x128xf32>, vector<16x128xf32> -> vector<16x128xf32>
    %c0_3 = arith.constant 0 : index
    %c0_4 = arith.constant 0 : index
    %3 = vector.load %arg3[%c0_3, %c0_4] : memref<1x128xf32, #tpu.memory_space<vmem>>, vector<1x128xf32>
    %4 = vector.broadcast %3 : vector<1x128xf32> to vector<16x128xf32>
    %5 = arith.addf %2, %4 : vector<16x128xf32>
    %c0_5 = arith.constant 0 : index
    %c0_6 = arith.constant 0 : index
    %6 = vector.load %arg7[%c0_5, %c0_6] : memref<16x128xf32, #tpu.memory_space<vmem>>, vector<16x128xf32>
    tpu.vector_store %arg7[%c0_5, %c0_6], %5 {strides = array<i32>} : memref<16x128xf32, #tpu.memory_space<vmem>>, vector<16x128xf32>,
    %c0_7 = arith.constant 0 : index
    %c0_8 = arith.constant 0 : index
    %7 = vector.load %arg2[%c0_7, %c0_8] : memref<32x128xf32, #tpu.memory_space<vmem>>, vector<32x128xf32>
    %8 = tpu.iota {dimensions = array<i32: 1>} : vector<2x128xi32>
    %c64_i32 = arith.constant 64 : i32
    %9 = vector.broadcast %c64_i32 : i32 to vector<2x128xi32>
    %10 = arith.cmpi sge, %8, %9 : vector<2x128xi32>
    %c96_i32 = arith.constant 96 : i32
    %11 = vector.broadcast %c96_i32 : i32 to vector<2x128xi32>
    %12 = arith.cmpi slt, %8, %11 : vector<2x128xi32>
    %13 = arith.andi %10, %12 : vector<2x128xi1>
    %cst_9 = arith.constant 0.000000e+00 : f32
    %14 = vector.broadcast %cst_9 : f32 to vector<2x32xf32>
    %cst_10 = arith.constant 0.000000e+00 : f32
    %15 = vector.broadcast %cst_10 : f32 to vector<2x32xf32>
    %c0_i32 = arith.constant 0 : i32
    %c2_i32 = arith.constant 2 : i32
    %16 = arith.muli %c0_i32, %c2_i32 : i32
    %17 = arith.index_cast %16 : i32 to index
    %c0_11 = arith.constant 0 : index
    %18 = vector.load %arg7[%17, %c0_11] : memref<16x128xf32, #tpu.memory_space<vmem>>, vector<2x128xf32>
    %cst_12 = arith.constant dense<0.000000e+00> : vector<2x128xf32>
    %19 = tpu.matmul %14, %7, %cst_12 {dimension_numbers = #tpu.dot_dimension_numbers<[1], [0], [0], [1], [0, 0, 1, 1], [], []>} : vector<2x32xf32>, vector<32x128xf32>, vector<2x128xf32> -> vector<2x128xf32>
    %20 = arith.addf %18, %19 : vector<2x128xf32>
    %21 = math.tanh %20 : vector<2x128xf32>
    %22 = arith.negf %20 : vector<2x128xf32>
    %23 = math.exp %22 : vector<2x128xf32>
    %cst_13 = arith.constant 1.000000e+00 : f32
    %24 = vector.broadcast %cst_13 : f32 to vector<2x128xf32>
    %25 = arith.addf %24, %23 : vector<2x128xf32>
    %26 = arith.divf %24, %25 : vector<2x128xf32>
    %27 = arith.select %13, %21, %26 : vector<2x128xi1>, vector<2x128xf32>
    %28 = vector.extract_strided_slice %27 {offsets = [0, 0], sizes = [2, 32], strides = [1, 1]} : vector<2x128xf32> to vector<2x32xf32>
    %29 = vector.extract_strided_slice %27 {offsets = [0, 32], sizes = [2, 32], strides = [1, 1]} : vector<2x128xf32> to vector<2x32xf32>
    %30 = vector.extract_strided_slice %27 {offsets = [0, 64], sizes = [2, 32], strides = [1, 1]} : vector<2x128xf32> to vector<2x32xf32>
    %31 = vector.extract_strided_slice %27 {offsets = [0, 96], sizes = [2, 32], strides = [1, 1]} : vector<2x128xf32> to vector<2x32xf32>
    %32 = arith.mulf %29, %15 : vector<2x32xf32>
    %33 = arith.mulf %28, %30 : vector<2x32xf32>
    %34 = arith.addf %32, %33 : vector<2x32xf32>
    %35 = math.tanh %34 : vector<2x32xf32>
    %36 = arith.mulf %31, %35 : vector<2x32xf32>
    %c1_i32 = arith.constant 1 : i32
    %c2_i32_14 = arith.constant 2 : i32
    %37 = arith.muli %c1_i32, %c2_i32_14 : i32
    %38 = arith.index_cast %37 : i32 to index
    %c0_15 = arith.constant 0 : index
    %39 = vector.load %arg7[%38, %c0_15] : memref<16x128xf32, #tpu.memory_space<vmem>>, vector<2x128xf32>
    %cst_16 = arith.constant dense<0.000000e+00> : vector<2x128xf32>
    %40 = tpu.matmul %36, %7, %cst_16 {dimension_numbers = #tpu.dot_dimension_numbers<[1], [0], [0], [1], [0, 0, 1, 1], [], []>} : vector<2x32xf32>, vector<32x128xf32>, vector<2x128xf32> -> vector<2x128xf32>
    %41 = arith.addf %39, %40 : vector<2x128xf32>
    %42 = math.tanh %41 : vector<2x128xf32>
    %43 = arith.negf %41 : vector<2x128xf32>
    %44 = math.exp %43 : vector<2x128xf32>
    %cst_17 = arith.constant 1.000000e+00 : f32
    %45 = vector.broadcast %cst_17 : f32 to vector<2x128xf32>
    %46 = arith.addf %45, %44 : vector<2x128xf32>
    %47 = arith.divf %45, %46 : vector<2x128xf32>
    %48 = arith.select %13, %42, %47 : vector<2x128xi1>, vector<2x128xf32>
    %49 = vector.extract_strided_slice %48 {offsets = [0, 0], sizes = [2, 32], strides = [1, 1]} : vector<2x128xf32> to vector<2x32xf32>
    %50 = vector.extract_strided_slice %48 {offsets = [0, 32], sizes = [2, 32], strides = [1, 1]} : vector<2x128xf32> to vector<2x32xf32>
    %51 = vector.extract_strided_slice %48 {offsets = [0, 64], sizes = [2, 32], strides = [1, 1]} : vector<2x128xf32> to vector<2x32xf32>
    %52 = vector.extract_strided_slice %48 {offsets = [0, 96], sizes = [2, 32], strides = [1, 1]} : vector<2x128xf32> to vector<2x32xf32>
    %53 = arith.mulf %50, %34 : vector<2x32xf32>
    %54 = arith.mulf %49, %51 : vector<2x32xf32>
    %55 = arith.addf %53, %54 : vector<2x32xf32>
    %56 = math.tanh %55 : vector<2x32xf32>
    %57 = arith.mulf %52, %56 : vector<2x32xf32>
    %c2_i32_18 = arith.constant 2 : i32
    %c2_i32_19 = arith.constant 2 : i32
    %58 = arith.muli %c2_i32_18, %c2_i32_19 : i32
    %59 = arith.index_cast %58 : i32 to index
    %c0_20 = arith.constant 0 : index
    %60 = vector.load %arg7[%59, %c0_20] : memref<16x128xf32, #tpu.memory_space<vmem>>, vector<2x128xf32>
    %cst_21 = arith.constant dense<0.000000e+00> : vector<2x128xf32>
    %61 = tpu.matmul %57, %7, %cst_21 {dimension_numbers = #tpu.dot_dimension_numbers<[1], [0], [0], [1], [0, 0, 1, 1], [], []>} : vector<2x32xf32>, vector<32x128xf32>, vector<2x128xf32> -> vector<2x128xf32>
    %62 = arith.addf %60, %61 : vector<2x128xf32>
    %63 = math.tanh %62 : vector<2x128xf32>
    %64 = arith.negf %62 : vector<2x128xf32>
    %65 = math.exp %64 : vector<2x128xf32>
    %cst_22 = arith.constant 1.000000e+00 : f32
    %66 = vector.broadcast %cst_22 : f32 to vector<2x128xf32>
    %67 = arith.addf %66, %65 : vector<2x128xf32>
    %68 = arith.divf %66, %67 : vector<2x128xf32>
    %69 = arith.select %13, %63, %68 : vector<2x128xi1>, vector<2x128xf32>
    %70 = vector.extract_strided_slice %69 {offsets = [0, 0], sizes = [2, 32], strides = [1, 1]} : vector<2x128xf32> to vector<2x32xf32>
    %71 = vector.extract_strided_slice %69 {offsets = [0, 32], sizes = [2, 32], strides = [1, 1]} : vector<2x128xf32> to vector<2x32xf32>
    %72 = vector.extract_strided_slice %69 {offsets = [0, 64], sizes = [2, 32], strides = [1, 1]} : vector<2x128xf32> to vector<2x32xf32>
    %73 = vector.extract_strided_slice %69 {offsets = [0, 96], sizes = [2, 32], strides = [1, 1]} : vector<2x128xf32> to vector<2x32xf32>
    %74 = arith.mulf %71, %55 : vector<2x32xf32>
    %75 = arith.mulf %70, %72 : vector<2x32xf32>
    %76 = arith.addf %74, %75 : vector<2x32xf32>
    %77 = math.tanh %76 : vector<2x32xf32>
    %78 = arith.mulf %73, %77 : vector<2x32xf32>
    %c3_i32 = arith.constant 3 : i32
    %c2_i32_23 = arith.constant 2 : i32
    %79 = arith.muli %c3_i32, %c2_i32_23 : i32
    %80 = arith.index_cast %79 : i32 to index
    %c0_24 = arith.constant 0 : index
    %81 = vector.load %arg7[%80, %c0_24] : memref<16x128xf32, #tpu.memory_space<vmem>>, vector<2x128xf32>
    %cst_25 = arith.constant dense<0.000000e+00> : vector<2x128xf32>
    %82 = tpu.matmul %78, %7, %cst_25 {dimension_numbers = #tpu.dot_dimension_numbers<[1], [0], [0], [1], [0, 0, 1, 1], [], []>} : vector<2x32xf32>, vector<32x128xf32>, vector<2x128xf32> -> vector<2x128xf32>
    %83 = arith.addf %81, %82 : vector<2x128xf32>
    %84 = math.tanh %83 : vector<2x128xf32>
    %85 = arith.negf %83 : vector<2x128xf32>
    %86 = math.exp %85 : vector<2x128xf32>
    %cst_26 = arith.constant 1.000000e+00 : f32
    %87 = vector.broadcast %cst_26 : f32 to vector<2x128xf32>
    %88 = arith.addf %87, %86 : vector<2x128xf32>
    %89 = arith.divf %87, %88 : vector<2x128xf32>
    %90 = arith.select %13, %84, %89 : vector<2x128xi1>, vector<2x128xf32>
    %91 = vector.extract_strided_slice %90 {offsets = [0, 0], sizes = [2, 32], strides = [1, 1]} : vector<2x128xf32> to vector<2x32xf32>
    %92 = vector.extract_strided_slice %90 {offsets = [0, 32], sizes = [2, 32], strides = [1, 1]} : vector<2x128xf32> to vector<2x32xf32>
    %93 = vector.extract_strided_slice %90 {offsets = [0, 64], sizes = [2, 32], strides = [1, 1]} : vector<2x128xf32> to vector<2x32xf32>
    %94 = vector.extract_strided_slice %90 {offsets = [0, 96], sizes = [2, 32], strides = [1, 1]} : vector<2x128xf32> to vector<2x32xf32>
    %95 = arith.mulf %92, %76 : vector<2x32xf32>
    %96 = arith.mulf %91, %93 : vector<2x32xf32>
    %97 = arith.addf %95, %96 : vector<2x32xf32>
    %98 = math.tanh %97 : vector<2x32xf32>
    %99 = arith.mulf %94, %98 : vector<2x32xf32>
    %c4_i32 = arith.constant 4 : i32
    %c2_i32_27 = arith.constant 2 : i32
    %100 = arith.muli %c4_i32, %c2_i32_27 : i32
    %101 = arith.index_cast %100 : i32 to index
    %c0_28 = arith.constant 0 : index
    %102 = vector.load %arg7[%101, %c0_28] : memref<16x128xf32, #tpu.memory_space<vmem>>, vector<2x128xf32>
    %cst_29 = arith.constant dense<0.000000e+00> : vector<2x128xf32>
    %103 = tpu.matmul %99, %7, %cst_29 {dimension_numbers = #tpu.dot_dimension_numbers<[1], [0], [0], [1], [0, 0, 1, 1], [], []>} : vector<2x32xf32>, vector<32x128xf32>, vector<2x128xf32> -> vector<2x128xf32>
    %104 = arith.addf %102, %103 : vector<2x128xf32>
    %105 = math.tanh %104 : vector<2x128xf32>
    %106 = arith.negf %104 : vector<2x128xf32>
    %107 = math.exp %106 : vector<2x128xf32>
    %cst_30 = arith.constant 1.000000e+00 : f32
    %108 = vector.broadcast %cst_30 : f32 to vector<2x128xf32>
    %109 = arith.addf %108, %107 : vector<2x128xf32>
    %110 = arith.divf %108, %109 : vector<2x128xf32>
    %111 = arith.select %13, %105, %110 : vector<2x128xi1>, vector<2x128xf32>
    %112 = vector.extract_strided_slice %111 {offsets = [0, 0], sizes = [2, 32], strides = [1, 1]} : vector<2x128xf32> to vector<2x32xf32>
    %113 = vector.extract_strided_slice %111 {offsets = [0, 32], sizes = [2, 32], strides = [1, 1]} : vector<2x128xf32> to vector<2x32xf32>
    %114 = vector.extract_strided_slice %111 {offsets = [0, 64], sizes = [2, 32], strides = [1, 1]} : vector<2x128xf32> to vector<2x32xf32>
    %115 = vector.extract_strided_slice %111 {offsets = [0, 96], sizes = [2, 32], strides = [1, 1]} : vector<2x128xf32> to vector<2x32xf32>
    %116 = arith.mulf %113, %97 : vector<2x32xf32>
    %117 = arith.mulf %112, %114 : vector<2x32xf32>
    %118 = arith.addf %116, %117 : vector<2x32xf32>
    %119 = math.tanh %118 : vector<2x32xf32>
    %120 = arith.mulf %115, %119 : vector<2x32xf32>
    %c5_i32 = arith.constant 5 : i32
    %c2_i32_31 = arith.constant 2 : i32
    %121 = arith.muli %c5_i32, %c2_i32_31 : i32
    %122 = arith.index_cast %121 : i32 to index
    %c0_32 = arith.constant 0 : index
    %123 = vector.load %arg7[%122, %c0_32] : memref<16x128xf32, #tpu.memory_space<vmem>>, vector<2x128xf32>
    %cst_33 = arith.constant dense<0.000000e+00> : vector<2x128xf32>
    %124 = tpu.matmul %120, %7, %cst_33 {dimension_numbers = #tpu.dot_dimension_numbers<[1], [0], [0], [1], [0, 0, 1, 1], [], []>} : vector<2x32xf32>, vector<32x128xf32>, vector<2x128xf32> -> vector<2x128xf32>
    %125 = arith.addf %123, %124 : vector<2x128xf32>
    %126 = math.tanh %125 : vector<2x128xf32>
    %127 = arith.negf %125 : vector<2x128xf32>
    %128 = math.exp %127 : vector<2x128xf32>
    %cst_34 = arith.constant 1.000000e+00 : f32
    %129 = vector.broadcast %cst_34 : f32 to vector<2x128xf32>
    %130 = arith.addf %129, %128 : vector<2x128xf32>
    %131 = arith.divf %129, %130 : vector<2x128xf32>
    %132 = arith.select %13, %126, %131 : vector<2x128xi1>, vector<2x128xf32>
    %133 = vector.extract_strided_slice %132 {offsets = [0, 0], sizes = [2, 32], strides = [1, 1]} : vector<2x128xf32> to vector<2x32xf32>
    %134 = vector.extract_strided_slice %132 {offsets = [0, 32], sizes = [2, 32], strides = [1, 1]} : vector<2x128xf32> to vector<2x32xf32>
    %135 = vector.extract_strided_slice %132 {offsets = [0, 64], sizes = [2, 32], strides = [1, 1]} : vector<2x128xf32> to vector<2x32xf32>
    %136 = vector.extract_strided_slice %132 {offsets = [0, 96], sizes = [2, 32], strides = [1, 1]} : vector<2x128xf32> to vector<2x32xf32>
    %137 = arith.mulf %134, %118 : vector<2x32xf32>
    %138 = arith.mulf %133, %135 : vector<2x32xf32>
    %139 = arith.addf %137, %138 : vector<2x32xf32>
    %140 = math.tanh %139 : vector<2x32xf32>
    %141 = arith.mulf %136, %140 : vector<2x32xf32>
    %c6_i32 = arith.constant 6 : i32
    %c2_i32_35 = arith.constant 2 : i32
    %142 = arith.muli %c6_i32, %c2_i32_35 : i32
    %143 = arith.index_cast %142 : i32 to index
    %c0_36 = arith.constant 0 : index
    %144 = vector.load %arg7[%143, %c0_36] : memref<16x128xf32, #tpu.memory_space<vmem>>, vector<2x128xf32>
    %cst_37 = arith.constant dense<0.000000e+00> : vector<2x128xf32>
    %145 = tpu.matmul %141, %7, %cst_37 {dimension_numbers = #tpu.dot_dimension_numbers<[1], [0], [0], [1], [0, 0, 1, 1], [], []>} : vector<2x32xf32>, vector<32x128xf32>, vector<2x128xf32> -> vector<2x128xf32>
    %146 = arith.addf %144, %145 : vector<2x128xf32>
    %147 = math.tanh %146 : vector<2x128xf32>
    %148 = arith.negf %146 : vector<2x128xf32>
    %149 = math.exp %148 : vector<2x128xf32>
    %cst_38 = arith.constant 1.000000e+00 : f32
    %150 = vector.broadcast %cst_38 : f32 to vector<2x128xf32>
    %151 = arith.addf %150, %149 : vector<2x128xf32>
    %152 = arith.divf %150, %151 : vector<2x128xf32>
    %153 = arith.select %13, %147, %152 : vector<2x128xi1>, vector<2x128xf32>
    %154 = vector.extract_strided_slice %153 {offsets = [0, 0], sizes = [2, 32], strides = [1, 1]} : vector<2x128xf32> to vector<2x32xf32>
    %155 = vector.extract_strided_slice %153 {offsets = [0, 32], sizes = [2, 32], strides = [1, 1]} : vector<2x128xf32> to vector<2x32xf32>
    %156 = vector.extract_strided_slice %153 {offsets = [0, 64], sizes = [2, 32], strides = [1, 1]} : vector<2x128xf32> to vector<2x32xf32>
    %157 = vector.extract_strided_slice %153 {offsets = [0, 96], sizes = [2, 32], strides = [1, 1]} : vector<2x128xf32> to vector<2x32xf32>
    %158 = arith.mulf %155, %139 : vector<2x32xf32>
    %159 = arith.mulf %154, %156 : vector<2x32xf32>
    %160 = arith.addf %158, %159 : vector<2x32xf32>
    %161 = math.tanh %160 : vector<2x32xf32>
    %162 = arith.mulf %157, %161 : vector<2x32xf32>
    %c7_i32 = arith.constant 7 : i32
    %c2_i32_39 = arith.constant 2 : i32
    %163 = arith.muli %c7_i32, %c2_i32_39 : i32
    %164 = arith.index_cast %163 : i32 to index
    %c0_40 = arith.constant 0 : index
    %165 = vector.load %arg7[%164, %c0_40] : memref<16x128xf32, #tpu.memory_space<vmem>>, vector<2x128xf32>
    %cst_41 = arith.constant dense<0.000000e+00> : vector<2x128xf32>
    %166 = tpu.matmul %162, %7, %cst_41 {dimension_numbers = #tpu.dot_dimension_numbers<[1], [0], [0], [1], [0, 0, 1, 1], [], []>} : vector<2x32xf32>, vector<32x128xf32>, vector<2x128xf32> -> vector<2x128xf32>
    %167 = arith.addf %165, %166 : vector<2x128xf32>
    %168 = math.tanh %167 : vector<2x128xf32>
    %169 = arith.negf %167 : vector<2x128xf32>
    %170 = math.exp %169 : vector<2x128xf32>
    %cst_42 = arith.constant 1.000000e+00 : f32
    %171 = vector.broadcast %cst_42 : f32 to vector<2x128xf32>
    %172 = arith.addf %171, %170 : vector<2x128xf32>
    %173 = arith.divf %171, %172 : vector<2x128xf32>
    %174 = arith.select %13, %168, %173 : vector<2x128xi1>, vector<2x128xf32>
    %175 = vector.extract_strided_slice %174 {offsets = [0, 0], sizes = [2, 32], strides = [1, 1]} : vector<2x128xf32> to vector<2x32xf32>
    %176 = vector.extract_strided_slice %174 {offsets = [0, 32], sizes = [2, 32], strides = [1, 1]} : vector<2x128xf32> to vector<2x32xf32>
    %177 = vector.extract_strided_slice %174 {offsets = [0, 64], sizes = [2, 32], strides = [1, 1]} : vector<2x128xf32> to vector<2x32xf32>
    %178 = vector.extract_strided_slice %174 {offsets = [0, 96], sizes = [2, 32], strides = [1, 1]} : vector<2x128xf32> to vector<2x32xf32>
    %179 = arith.mulf %176, %160 : vector<2x32xf32>
    %180 = arith.mulf %175, %177 : vector<2x32xf32>
    %181 = arith.addf %179, %180 : vector<2x32xf32>
    %182 = math.tanh %181 : vector<2x32xf32>
    %183 = arith.mulf %178, %182 : vector<2x32xf32>
    %c8_i32 = arith.constant 8 : i32
    %c0_43 = arith.constant 0 : index
    %c0_44 = arith.constant 0 : index
    %184 = vector.load %arg4[%c0_43, %c0_44] : memref<32x128xf32, #tpu.memory_space<vmem>>, vector<32x128xf32>
    %cst_45 = arith.constant dense<0.000000e+00> : vector<2x128xf32>
    %185 = tpu.matmul %183, %184, %cst_45 {dimension_numbers = #tpu.dot_dimension_numbers<[1], [0], [0], [1], [0, 0, 1, 1], [], []>} : vector<2x32xf32>, vector<32x128xf32>, vector<2x128xf32> -> vector<2x128xf32>
    %c0_46 = arith.constant 0 : index
    %c0_47 = arith.constant 0 : index
    %186 = vector.load %arg5[%c0_46, %c0_47] : memref<1x128xf32, #tpu.memory_space<vmem>>, vector<1x128xf32>
    %187 = vector.broadcast %186 : vector<1x128xf32> to vector<2x128xf32>
    %188 = arith.addf %185, %187 : vector<2x128xf32>
    %c0_48 = arith.constant 0 : index
    %c0_49 = arith.constant 0 : index
    %189 = vector.load %arg6[%c0_48, %c0_49] : memref<2x128xf32, #tpu.memory_space<vmem>>, vector<2x128xf32>
    tpu.vector_store %arg6[%c0_48, %c0_49], %188 {strides = array<i32>} : memref<2x128xf32, #tpu.memory_space<vmem>>, vector<2x128xf32>,
    return
  }
}

</mosaic_0001>

<llo_original>
// kernel: tpu_custom_call.1
$region0: #{tpu_custom_call.1}
  #allocation0 [shape = 'u32[]', space=smem, size = 0x4, offset = 0x4, fixed_abs, tag = 'smem constant byte address 0x4 - core index']
  #allocation1 [shape = 'u32[144,128]{1,0:T(1,128)}', space=vmem, size = 0x12000, scoped, tag = 'internal scratch']
  #allocation2 [shape = 'f32[16,128]{1,0:T(8,128)}', space=vmem, size = 0x2000, scoped, tag = 'scratch operand']
  %s0 = inlined_call_operand.hbm [shape: f32[16,16], index: 0, kind: input, shape index: {}]
  %s1 = inlined_call_operand.hbm [shape: f32[16,128], index: 1, kind: input, shape index: {}]
  %s2 = inlined_call_operand.hbm [shape: f32[32,128], index: 2, kind: input, shape index: {}]
  %s3 = inlined_call_operand.vmem [shape: f32[1,128], index: 3, kind: input, shape index: {}]
  %s4 = inlined_call_operand.hbm [shape: f32[32,128], index: 4, kind: input, shape index: {}]
  %s5 = inlined_call_operand.vmem [shape: f32[1,128], index: 5, kind: input, shape index: {}]
  %s6 = inlined_call_operand.hbm [shape: f32[2,128], index: 6, kind: output, shape index: {}]
  %s7 = sld [smem:[#allocation0]]
  $region50: #{tpu_custom_call.1} parent=0
    _
  %s9 = ssub.s32 1, %s7
  %s10 = scalar_select 0, %s9, %s7
  $region1: #{tpu_custom_call.1} parent=0
    #allocation3 [shape = 'u8[8192]{0}', space=vmem, size = 0x2000, scoped, tag = 'input window, operand 0, single buffered']
    #allocation4 [shape = 's32[1]{0}', space=sflag, size = 0x4, scoped, tag = 'scoped memory for tpu_custom_call.1']
    #allocation5 [shape = 's32[1]{0}', space=sflag, size = 0x4, scoped, tag = 'scoped memory for tpu_custom_call.1']
    #allocation6 [shape = 'u8[8192]{0}', space=vmem, size = 0x2000, scoped, tag = 'input window, operand 1, single buffered']
    #allocation7 [shape = 's32[1]{0}', space=sflag, size = 0x4, scoped, tag = 'scoped memory for tpu_custom_call.1']
    #allocation8 [shape = 'u8[16384]{0}', space=vmem, size = 0x4000, scoped, tag = 'input window, operand 2, single buffered']
    #allocation9 [shape = 'u8[16384]{0}', space=vmem, size = 0x4000, scoped, tag = 'input window, operand 4, single buffered']
    #allocation10 [shape = 's32[1]{0}', space=sflag, size = 0x4, scoped, tag = 'scoped memory for tpu_custom_call.1']
    #allocation11 [shape = 'u8[1024]{0}', space=vmem, size = 0x400, scoped, tag = 'output window, operand 0, single buffered']
    %11 = vsyncpa [#allocation4], 0
    %12 = vsyncpa [#allocation7], 0
    %13 = vsyncpa [#allocation10], 0
    %14 = vsyncpa [#allocation5], 0
    // Predicated region
    $region2: #{tpu_custom_call.1} parent=1 // pred_check
      _
    $region3: #{tpu_custom_call.1} parent=1 // pred_check_branch
      %16 = sbr.rel (0) target = $region5
    $region4: #{tpu_custom_call.1} parent=1 // pred_region
      %s18 = ssub.s32 256, 256
      %19 = vsyncadd [#allocation4], %s18
      %s20 = sshll.u32 [#allocation3], 4
      %s21 = int_to_ptr.vmem [resolvable:$true] %s20
      %26 = dma.hbm_to_vmem [thread:$0]  %s0, 256, %s21, [#allocation4], 128, 128, 8
    $region5: #{tpu_custom_call.1} parent=1 // pred_fallthru
      _
    // Predicated region
    $region6: #{tpu_custom_call.1} parent=1 // pred_check
      _
    $region7: #{tpu_custom_call.1} parent=1 // pred_check_branch
      %28 = sbr.rel (0) target = $region9
    $region8: #{tpu_custom_call.1} parent=1 // pred_region
      %s30 = ssub.s32 256, 256
      %31 = vsyncadd [#allocation7], %s30
      %s32 = sshll.u32 [#allocation6], 4
      %s33 = int_to_ptr.vmem [resolvable:$true] %s32
      %38 = dma.hbm_to_vmem [thread:$0]  %s1, 256, %s33, [#allocation7], 128, 128, 8
    $region9: #{tpu_custom_call.1} parent=1 // pred_fallthru
      _
    // Predicated region
    $region10: #{tpu_custom_call.1} parent=1 // pred_check
      _
    $region11: #{tpu_custom_call.1} parent=1 // pred_check_branch
      %40 = sbr.rel (0) target = $region13
    $region12: #{tpu_custom_call.1} parent=1 // pred_region
      %s42 = ssub.s32 512, 512
      %43 = vsyncadd [#allocation7], %s42
      %s44 = sshll.u32 [#allocation8], 4
      %s45 = int_to_ptr.vmem [resolvable:$true] %s44
      %50 = dma.hbm_to_vmem [thread:$0]  %s2, 512, %s45, [#allocation7], 128, 128, 8
    $region13: #{tpu_custom_call.1} parent=1 // pred_fallthru
      _
    // Predicated region
    $region14: #{tpu_custom_call.1} parent=1 // pred_check
      _
    $region15: #{tpu_custom_call.1} parent=1 // pred_check_branch
      %52 = sbr.rel (0) target = $region17
    $region16: #{tpu_custom_call.1} parent=1 // pred_region
      _
    $region17: #{tpu_custom_call.1} parent=1 // pred_fallthru
      _
    // Predicated region
    $region18: #{tpu_custom_call.1} parent=1 // pred_check
      _
    $region19: #{tpu_custom_call.1} parent=1 // pred_check_branch
      %54 = sbr.rel (0) target = $region21
    $region20: #{tpu_custom_call.1} parent=1 // pred_region
      %s56 = ssub.s32 512, 512
      %57 = vsyncadd [#allocation10], %s56
      %s58 = sshll.u32 [#allocation9], 4
      %s59 = int_to_ptr.vmem [resolvable:$true] %s58
      %64 = dma.hbm_to_vmem [thread:$0]  %s4, 512, %s59, [#allocation10], 128, 128, 8
    $region21: #{tpu_custom_call.1} parent=1 // pred_fallthru
      _
    // Predicated region
    $region22: #{tpu_custom_call.1} parent=1 // pred_check
      _
    $region23: #{tpu_custom_call.1} parent=1 // pred_check_branch
      %66 = sbr.rel (0) target = $region25
    $region24: #{tpu_custom_call.1} parent=1 // pred_region
      _
    $region25: #{tpu_custom_call.1} parent=1 // pred_fallthru
      _
    // Predicated region
    $region26: #{tpu_custom_call.1} parent=1 // pred_check
      _
    $region27: #{tpu_custom_call.1} parent=1 // pred_check_branch
      %68 = sbr.rel (0) target = $region29
    $region28: #{tpu_custom_call.1} parent=1 // pred_region
      %69 = dma.done [#allocation4], 256
    $region29: #{tpu_custom_call.1} parent=1 // pred_fallthru
      _
    // Predicated region
    $region30: #{tpu_custom_call.1} parent=1 // pred_check
      _
    $region31: #{tpu_custom_call.1} parent=1 // pred_check_branch
      %71 = sbr.rel (0) target = $region33
    $region32: #{tpu_custom_call.1} parent=1 // pred_region
      %72 = dma.done [#allocation7], 256
    $region33: #{tpu_custom_call.1} parent=1 // pred_fallthru
      _
    // Predicated region
    $region34: #{tpu_custom_call.1} parent=1 // pred_check
      _
    $region35: #{tpu_custom_call.1} parent=1 // pred_check_branch
      %74 = sbr.rel (0) target = $region37
    $region36: #{tpu_custom_call.1} parent=1 // pred_region
      %75 = dma.done [#allocation7], 512
    $region37: #{tpu_custom_call.1} parent=1 // pred_fallthru
      _
    // Predicated region
    $region38: #{tpu_custom_call.1} parent=1 // pred_check
      _
    $region39: #{tpu_custom_call.1} parent=1 // pred_check_branch
      %77 = sbr.rel (0) target = $region41
    $region40: #{tpu_custom_call.1} parent=1 // pred_region
      %78 = dma.done [#allocation10], 512
    $region41: #{tpu_custom_call.1} parent=1 // pred_fallthru
      _
    %v79 = vld [vmem:[#allocation3] sm:$0xff]
    %v80 = vld [vmem:[#allocation3 + $0x8] sm:$0xff]
    %v81 = vld [vmem:[#allocation6] sm:$0xff]
    %v82 = vld [vmem:[#allocation6 + $0x8] sm:$0xff]
    %v83 = vld [vmem:[%s3] sm:$0x1]
    %v85 = vlaneseq
    %v86 = vshrl.u32 %v85, 7
    %v87 = vsub.s32 0, %v86
    %v88 = vrot.slane %v83, %v87
    %vm90 = vcmask 130048
    %v92 = vsel %vm90, %v79, 0
    %v95 = vsel %vm90, %v80, 0
    %97 = vmatprep.subr.mxu0 0.0
    %98 = vmatpush1.msra.mxu0 %v81
    %99 = vmatprep.subr.mxu0 0.0
    %100 = vmatpush1.msra.mxu0 %v82
    %101 = vmatprep.subr.mxu0 0.0
    %102 = vmatpush1.msra.mxu0 0.0
    %103 = vmatprep.subr.mxu0 0.0
    %104 = vmatpush1.msra.mxu0 0.0
    %105 = vmatprep.subr.mxu0 0.0
    %106 = vmatpush1.msra.mxu0 0.0
    %107 = vmatprep.subr.mxu0 0.0
    %108 = vmatpush1.msra.mxu0 0.0
    %109 = vmatprep.subr.mxu0 0.0
    %110 = vmatpush1.msra.mxu0 0.0
    %111 = vmatprep.subr.mxu0 0.0
    %112 = vmatpush1.msra.mxu0 0.0
    %113 = vmatprep.subr.mxu0 0.0
    %114 = vmatpush1.msra.mxu0 0.0
    %115 = vmatprep.subr.mxu0 0.0
    %116 = vmatpush1.msra.mxu0 0.0
    %117 = vmatprep.subr.mxu0 0.0
    %118 = vmatpush1.msra.mxu0 0.0
    %119 = vmatprep.subr.mxu0 0.0
    %120 = vmatpush1.msra.mxu0 0.0
    %121 = vmatprep.subr.mxu0 0.0
    %122 = vmatpush1.msra.mxu0 0.0
    %123 = vmatprep.subr.mxu0 0.0
    %124 = vmatpush1.msra.mxu0 0.0
    %125 = vmatprep.subr.mxu0 0.0
    %126 = vmatpush1.msra.mxu0 0.0
    %127 = vmatprep.subr.mxu0 0.0
    %128 = vmatpush1.msra.mxu0 0.0
    %129 = vmatprep.subr.mxu0 0.0
    %130 = vmatpush1.msra.mxu0 0.0
    %131 = vmatprep.subr.mxu0 0.0
    %132 = vmatpush1.msra.mxu0 0.0
    %133 = vmatprep.subr.mxu0 0.0
    %134 = vmatpush1.msra.mxu0 0.0
    %135 = vmatprep.subr.mxu0 0.0
    %136 = vmatpush1.msra.mxu0 0.0
    %137 = vmatprep.subr.mxu0 0.0
    %138 = vmatpush1.msra.mxu0 0.0
    %139 = vmatprep.subr.mxu0 0.0
    %140 = vmatpush1.msra.mxu0 0.0
    %141 = vmatprep.subr.mxu0 0.0
    %142 = vmatpush1.msra.mxu0 0.0
    %143 = vmatprep.subr.mxu0 0.0
    %144 = vmatpush1.msra.mxu0 0.0
    %145 = vmatprep.subr.mxu0 0.0
    %146 = vmatpush1.msra.mxu0 0.0
    %147 = vmatprep.subr.mxu0 0.0
    %148 = vmatpush1.msra.mxu0 0.0
    %149 = vmatprep.subr.mxu0 0.0
    %150 = vmatpush1.msra.mxu0 0.0
    %151 = vmatprep.subr.mxu0 0.0
    %152 = vmatpush1.msra.mxu0 0.0
    %153 = vmatprep.subr.mxu0 0.0
    %154 = vmatpush1.msra.mxu0 0.0
    %155 = vmatprep.subr.mxu0 0.0
    %156 = vmatpush1.msra.mxu0 0.0
    %157 = vmatprep.subr.mxu0 0.0
    %158 = vmatpush1.msra.mxu0 0.0
    %159 = vmatprep.subr.mxu0 0.0
    %160 = vmatpush1.msra.mxu0 0.0
    %161 = vmatprep.mubr.f32.mxu0 0.0
    %162 = vmatmul.mubr.f32.gmra.mrb[0].mxu0 %v92
    %v163 = vpop.f32.mrb[0].mxu0
    %v164 = vadd.f32 %v88, %v163
    %v165 = vpop.f32.mrb[0].mxu0
    %166 = vmatprep.mubr.f32.mxu0 0.0
    %167 = vmatmul.mubr.f32.gmra.mrb[0].mxu0 %v95
    %v168 = vpop.f32.mrb[0].mxu0
    %v169 = vadd.f32 %v88, %v168
    %v170 = vpop.f32.mrb[0].mxu0
    %171 = vdwg.mxu0
    %172 = vst [vmem:[#allocation2] sm:$0xff] %v164
    %173 = vst [vmem:[#allocation2 + $0x8] sm:$0xff] %v169
    %v174 = vld [vmem:[#allocation8] sm:$0xff]
    %v175 = vld [vmem:[#allocation8 + $0x8] sm:$0xff]
    %v176 = vld [vmem:[#allocation8 + $0x10] sm:$0xff]
    %v177 = vld [vmem:[#allocation8 + $0x18] sm:$0xff]
    %v178 = vlaneseq
    %v179 = vand.u32 %v178, 127
    %vm180 = vcmp.ge.s32.totalorder %v179, 64
    %vm181 = vcmp.lt.s32.totalorder %v179, 96
    %vm182 = vmand %vm180, %vm181
    %v183 = vld [vmem:[#allocation2] sm:$0x3]
    %vm184 = vcmask 261120
    %v186 = vsel %vm184, 0.0, 0
    %188 = vmatprep.subr.mxu0 0.0
    %189 = vmatpush1.msra.mxu0 %v174
    %190 = vmatprep.subr.mxu0 0.0
    %191 = vmatpush1.msra.mxu0 %v175
    %192 = vmatprep.subr.mxu0 0.0
    %193 = vmatpush1.msra.mxu0 %v176
    %194 = vmatprep.subr.mxu0 0.0
    %195 = vmatpush1.msra.mxu0 %v177
    %196 = vmatprep.subr.mxu0 0.0
    %197 = vmatpush1.msra.mxu0 0.0
    %198 = vmatprep.subr.mxu0 0.0
    %199 = vmatpush1.msra.mxu0 0.0
    %200 = vmatprep.subr.mxu0 0.0
    %201 = vmatpush1.msra.mxu0 0.0
    %202 = vmatprep.subr.mxu0 0.0
    %203 = vmatpush1.msra.mxu0 0.0
    %204 = vmatprep.subr.mxu0 0.0
    %205 = vmatpush1.msra.mxu0 0.0
    %206 = vmatprep.subr.mxu0 0.0
    %207 = vmatpush1.msra.mxu0 0.0
    %208 = vmatprep.subr.mxu0 0.0
    %209 = vmatpush1.msra.mxu0 0.0
    %210 = vmatprep.subr.mxu0 0.0
    %211 = vmatpush1.msra.mxu0 0.0
    %212 = vmatprep.subr.mxu0 0.0
    %213 = vmatpush1.msra.mxu0 0.0
    %214 = vmatprep.subr.mxu0 0.0
    %215 = vmatpush1.msra.mxu0 0.0
    %216 = vmatprep.subr.mxu0 0.0
    %217 = vmatpush1.msra.mxu0 0.0
    %218 = vmatprep.subr.mxu0 0.0
    %219 = vmatpush1.msra.mxu0 0.0
    %220 = vmatprep.subr.mxu0 0.0
    %221 = vmatpush1.msra.mxu0 0.0
    %222 = vmatprep.subr.mxu0 0.0
    %223 = vmatpush1.msra.mxu0 0.0
    %224 = vmatprep.subr.mxu0 0.0
    %225 = vmatpush1.msra.mxu0 0.0
    %226 = vmatprep.subr.mxu0 0.0
    %227 = vmatpush1.msra.mxu0 0.0
    %228 = vmatprep.subr.mxu0 0.0
    %229 = vmatpush1.msra.mxu0 0.0
    %230 = vmatprep.subr.mxu0 0.0
    %231 = vmatpush1.msra.mxu0 0.0
    %232 = vmatprep.subr.mxu0 0.0
    %233 = vmatpush1.msra.mxu0 0.0
    %234 = vmatprep.subr.mxu0 0.0
    %235 = vmatpush1.msra.mxu0 0.0
    %236 = vmatprep.subr.mxu0 0.0
    %237 = vmatpush1.msra.mxu0 0.0
    %238 = vmatprep.subr.mxu0 0.0
    %239 = vmatpush1.msra.mxu0 0.0
    %240 = vmatprep.subr.mxu0 0.0
    %241 = vmatpush1.msra.mxu0 0.0
    %242 = vmatprep.subr.mxu0 0.0
    %243 = vmatpush1.msra.mxu0 0.0
    %244 = vmatprep.subr.mxu0 0.0
    %245 = vmatpush1.msra.mxu0 0.0
    %246 = vmatprep.subr.mxu0 0.0
    %247 = vmatpush1.msra.mxu0 0.0
    %248 = vmatprep.subr.mxu0 0.0
    %249 = vmatpush1.msra.mxu0 0.0
    %250 = vmatprep.subr.mxu0 0.0
    %251 = vmatpush1.msra.mxu0 0.0
    %252 = vmatprep.mubr.f32.mxu0 0.0
    %253 = vmatmul.mubr.f32.gmra.mrb[0].mxu0 %v186
    %v254 = vpop.f32.mrb[0].mxu0
    %v255 = vadd.f32 0.0, %v254
    %v256 = vpop.f32.mrb[0].mxu0
    %257 = vdwg.mxu0
    %v258 = vadd.f32 %v183, %v255
    %v259 = vtanh.pop %v258
    %v260 = vxor.u32 %v258, 2147483648
    %v261 = vmul.f32 %v260, 1.442695
    %v262 = vpow.pop %v261
    %v263 = vadd.f32 %v262, 1.0
    %v264 = vrcp.pop %v263
    %v265 = vmul.f32 1.0, %v264
    %v266 = vsel %vm182, %v259, %v265
    %v267 = vmul.f32 %v266, 0.0
    %269 = vrot.lane.b32.xlu0 %v266, 64
    %v270 = vpop.permute.xlu0 %269
    %v272 = vmul.f32 %v266, %v270
    %274 = vrot.lane.b32.xlu0 %v272, 32
    %v275 = vpop.permute.xlu0 %274
    %v277 = vadd.f32 %v267, %v275
    %v278 = vtanh.pop %v277
    %280 = vrot.lane.b32.xlu0 %v278, 64
    %v281 = vpop.permute.xlu0 %280
    %v283 = vmul.f32 %v266, %v281
    %v284 = vld [vmem:[#allocation2 + $0x2] sm:$0x3]
    %286 = vrot.lane.b32.xlu0 %v283, 32
    %v287 = vpop.permute.xlu0 %286
    %v288 = vsel %vm184, %v287, 0
    %290 = vmatprep.subr.mxu0 0.0
    %291 = vmatpush1.msra.mxu0 %v174
    %292 = vmatprep.subr.mxu0 0.0
    %293 = vmatpush1.msra.mxu0 %v175
    %294 = vmatprep.subr.mxu0 0.0
    %295 = vmatpush1.msra.mxu0 %v176
    %296 = vmatprep.subr.mxu0 0.0
    %297 = vmatpush1.msra.mxu0 %v177
    %298 = vmatprep.subr.mxu0 0.0
    %299 = vmatpush1.msra.mxu0 0.0
    %300 = vmatprep.subr.mxu0 0.0
    %301 = vmatpush1.msra.mxu0 0.0
    %302 = vmatprep.subr.mxu0 0.0
    %303 = vmatpush1.msra.mxu0 0.0
    %304 = vmatprep.subr.mxu0 0.0
    %305 = vmatpush1.msra.mxu0 0.0
    %306 = vmatprep.subr.mxu0 0.0
    %307 = vmatpush1.msra.mxu0 0.0
    %308 = vmatprep.subr.mxu0 0.0
    %309 = vmatpush1.msra.mxu0 0.0
    %310 = vmatprep.subr.mxu0 0.0
    %311 = vmatpush1.msra.mxu0 0.0
    %312 = vmatprep.subr.mxu0 0.0
    %313 = vmatpush1.msra.mxu0 0.0
    %314 = vmatprep.subr.mxu0 0.0
    %315 = vmatpush1.msra.mxu0 0.0
    %316 = vmatprep.subr.mxu0 0.0
    %317 = vmatpush1.msra.mxu0 0.0
    %318 = vmatprep.subr.mxu0 0.0
    %319 = vmatpush1.msra.mxu0 0.0
    %320 = vmatprep.subr.mxu0 0.0
    %321 = vmatpush1.msra.mxu0 0.0
    %322 = vmatprep.subr.mxu0 0.0
    %323 = vmatpush1.msra.mxu0 0.0
    %324 = vmatprep.subr.mxu0 0.0
    %325 = vmatpush1.msra.mxu0 0.0
    %326 = vmatprep.subr.mxu0 0.0
    %327 = vmatpush1.msra.mxu0 0.0
    %328 = vmatprep.subr.mxu0 0.0
    %329 = vmatpush1.msra.mxu0 0.0
    %330 = vmatprep.subr.mxu0 0.0
    %331 = vmatpush1.msra.mxu0 0.0
    %332 = vmatprep.subr.mxu0 0.0
    %333 = vmatpush1.msra.mxu0 0.0
    %334 = vmatprep.subr.mxu0 0.0
    %335 = vmatpush1.msra.mxu0 0.0
    %336 = vmatprep.subr.mxu0 0.0
    %337 = vmatpush1.msra.mxu0 0.0
    %338 = vmatprep.subr.mxu0 0.0
    %339 = vmatpush1.msra.mxu0 0.0
    %340 = vmatprep.subr.mxu0 0.0
    %341 = vmatpush1.msra.mxu0 0.0
    %342 = vmatprep.subr.mxu0 0.0
    %343 = vmatpush1.msra.mxu0 0.0
    %344 = vmatprep.subr.mxu0 0.0
    %345 = vmatpush1.msra.mxu0 0.0
    %346 = vmatprep.subr.mxu0 0.0
    %347 = vmatpush1.msra.mxu0 0.0
    %348 = vmatprep.subr.mxu0 0.0
    %349 = vmatpush1.msra.mxu0 0.0
    %350 = vmatprep.subr.mxu0 0.0
    %351 = vmatpush1.msra.mxu0 0.0
    %352 = vmatprep.subr.mxu0 0.0
    %353 = vmatpush1.msra.mxu0 0.0
    %354 = vmatprep.mubr.f32.mxu0 0.0
    %355 = vmatmul.mubr.f32.gmra.mrb[0].mxu0 %v288
    %v356 = vpop.f32.mrb[0].mxu0
    %v357 = vadd.f32 0.0, %v356
    %v358 = vpop.f32.mrb[0].mxu0
    %359 = vdwg.mxu0
    %v360 = vadd.f32 %v284, %v357
    %v361 = vtanh.pop %v360
    %v362 = vxor.u32 %v360, 2147483648
    %v363 = vmul.f32 %v362, 1.442695
    %v364 = vpow.pop %v363
    %v365 = vadd.f32 %v364, 1.0
    %v366 = vrcp.pop %v365
    %v367 = vmul.f32 1.0, %v366
    %v368 = vsel %vm182, %v361, %v367
    %v369 = vmul.f32 %v368, %v277
    %371 = vrot.lane.b32.xlu0 %v368, 64
    %v372 = vpop.permute.xlu0 %371
    %v374 = vmul.f32 %v368, %v372
    %376 = vrot.lane.b32.xlu0 %v374, 32
    %v377 = vpop.permute.xlu0 %376
    %v379 = vadd.f32 %v369, %v377
    %v380 = vtanh.pop %v379
    %382 = vrot.lane.b32.xlu0 %v380, 64
    %v383 = vpop.permute.xlu0 %382
    %v385 = vmul.f32 %v368, %v383
    %v386 = vld [vmem:[#allocation2 + $0x4] sm:$0x3]
    %388 = vrot.lane.b32.xlu0 %v385, 32
    %v389 = vpop.permute.xlu0 %388
    %v390 = vsel %vm184, %v389, 0
    %392 = vmatprep.subr.mxu0 0.0
    %393 = vmatpush1.msra.mxu0 %v174
    %394 = vmatprep.subr.mxu0 0.0
    %395 = vmatpush1.msra.mxu0 %v175
    %396 = vmatprep.subr.mxu0 0.0
    %397 = vmatpush1.msra.mxu0 %v176
    %398 = vmatprep.subr.mxu0 0.0
    %399 = vmatpush1.msra.mxu0 %v177
    %400 = vmatprep.subr.mxu0 0.0
    %401 = vmatpush1.msra.mxu0 0.0
    %402 = vmatprep.subr.mxu0 0.0
    %403 = vmatpush1.msra.mxu0 0.0
    %404 = vmatprep.subr.mxu0 0.0
    %405 = vmatpush1.msra.mxu0 0.0
    %406 = vmatprep.subr.mxu0 0.0
    %407 = vmatpush1.msra.mxu0 0.0
    %408 = vmatprep.subr.mxu0 0.0
    %409 = vmatpush1.msra.mxu0 0.0
    %410 = vmatprep.subr.mxu0 0.0
    %411 = vmatpush1.msra.mxu0 0.0
    %412 = vmatprep.subr.mxu0 0.0
    %413 = vmatpush1.msra.mxu0 0.0
    %414 = vmatprep.subr.mxu0 0.0
    %415 = vmatpush1.msra.mxu0 0.0
    %416 = vmatprep.subr.mxu0 0.0
    %417 = vmatpush1.msra.mxu0 0.0
    %418 = vmatprep.subr.mxu0 0.0
    %419 = vmatpush1.msra.mxu0 0.0
    %420 = vmatprep.subr.mxu0 0.0
    %421 = vmatpush1.msra.mxu0 0.0
    %422 = vmatprep.subr.mxu0 0.0
    %423 = vmatpush1.msra.mxu0 0.0
    %424 = vmatprep.subr.mxu0 0.0
    %425 = vmatpush1.msra.mxu0 0.0
    %426 = vmatprep.subr.mxu0 0.0
    %427 = vmatpush1.msra.mxu0 0.0
    %428 = vmatprep.subr.mxu0 0.0
    %429 = vmatpush1.msra.mxu0 0.0
    %430 = vmatprep.subr.mxu0 0.0
    %431 = vmatpush1.msra.mxu0 0.0
    %432 = vmatprep.subr.mxu0 0.0
    %433 = vmatpush1.msra.mxu0 0.0
    %434 = vmatprep.subr.mxu0 0.0
    %435 = vmatpush1.msra.mxu0 0.0
    %436 = vmatprep.subr.mxu0 0.0
    %437 = vmatpush1.msra.mxu0 0.0
    %438 = vmatprep.subr.mxu0 0.0
    %439 = vmatpush1.msra.mxu0 0.0
    %440 = vmatprep.subr.mxu0 0.0
    %441 = vmatpush1.msra.mxu0 0.0
    %442 = vmatprep.subr.mxu0 0.0
    %443 = vmatpush1.msra.mxu0 0.0
    %444 = vmatprep.subr.mxu0 0.0
    %445 = vmatpush1.msra.mxu0 0.0
    %446 = vmatprep.subr.mxu0 0.0
    %447 = vmatpush1.msra.mxu0 0.0
    %448 = vmatprep.subr.mxu0 0.0
    %449 = vmatpush1.msra.mxu0 0.0
    %450 = vmatprep.subr.mxu0 0.0
    %451 = vmatpush1.msra.mxu0 0.0
    %452 = vmatprep.subr.mxu0 0.0
    %453 = vmatpush1.msra.mxu0 0.0
    %454 = vmatprep.subr.mxu0 0.0
    %455 = vmatpush1.msra.mxu0 0.0
    %456 = vmatprep.mubr.f32.mxu0 0.0
    %457 = vmatmul.mubr.f32.gmra.mrb[0].mxu0 %v390
    %v458 = vpop.f32.mrb[0].mxu0
    %v459 = vadd.f32 0.0, %v458
    %v460 = vpop.f32.mrb[0].mxu0
    %461 = vdwg.mxu0
    %v462 = vadd.f32 %v386, %v459
    %v463 = vtanh.pop %v462
    %v464 = vxor.u32 %v462, 2147483648
    %v465 = vmul.f32 %v464, 1.442695
    %v466 = vpow.pop %v465
    %v467 = vadd.f32 %v466, 1.0
    %v468 = vrcp.pop %v467
    %v469 = vmul.f32 1.0, %v468
    %v470 = vsel %vm182, %v463, %v469
    %v471 = vmul.f32 %v470, %v379
    %473 = vrot.lane.b32.xlu0 %v470, 64
    %v474 = vpop.permute.xlu0 %473
    %v476 = vmul.f32 %v470, %v474
    %478 = vrot.lane.b32.xlu0 %v476, 32
    %v479 = vpop.permute.xlu0 %478
    %v481 = vadd.f32 %v471, %v479
    %v482 = vtanh.pop %v481
    %484 = vrot.lane.b32.xlu0 %v482, 64
    %v485 = vpop.permute.xlu0 %484
    %v487 = vmul.f32 %v470, %v485
    %v488 = vld [vmem:[#allocation2 + $0x6] sm:$0x3]
    %490 = vrot.lane.b32.xlu0 %v487, 32
    %v491 = vpop.permute.xlu0 %490
    %v492 = vsel %vm184, %v491, 0
    %494 = vmatprep.subr.mxu0 0.0
    %495 = vmatpush1.msra.mxu0 %v174
    %496 = vmatprep.subr.mxu0 0.0
    %497 = vmatpush1.msra.mxu0 %v175
    %498 = vmatprep.subr.mxu0 0.0
    %499 = vmatpush1.msra.mxu0 %v176
    %500 = vmatprep.subr.mxu0 0.0
    %501 = vmatpush1.msra.mxu0 %v177
    %502 = vmatprep.subr.mxu0 0.0
    %503 = vmatpush1.msra.mxu0 0.0
    %504 = vmatprep.subr.mxu0 0.0
    %505 = vmatpush1.msra.mxu0 0.0
    %506 = vmatprep.subr.mxu0 0.0
    %507 = vmatpush1.msra.mxu0 0.0
    %508 = vmatprep.subr.mxu0 0.0
    %509 = vmatpush1.msra.mxu0 0.0
    %510 = vmatprep.subr.mxu0 0.0
    %511 = vmatpush1.msra.mxu0 0.0
    %512 = vmatprep.subr.mxu0 0.0
    %513 = vmatpush1.msra.mxu0 0.0
    %514 = vmatprep.subr.mxu0 0.0
    %515 = vmatpush1.msra.mxu0 0.0
    %516 = vmatprep.subr.mxu0 0.0
    %517 = vmatpush1.msra.mxu0 0.0
    %518 = vmatprep.subr.mxu0 0.0
    %519 = vmatpush1.msra.mxu0 0.0
    %520 = vmatprep.subr.mxu0 0.0
    %521 = vmatpush1.msra.mxu0 0.0
    %522 = vmatprep.subr.mxu0 0.0
    %523 = vmatpush1.msra.mxu0 0.0
    %524 = vmatprep.subr.mxu0 0.0
    %525 = vmatpush1.msra.mxu0 0.0
    %526 = vmatprep.subr.mxu0 0.0
    %527 = vmatpush1.msra.mxu0 0.0
    %528 = vmatprep.subr.mxu0 0.0
    %529 = vmatpush1.msra.mxu0 0.0
    %530 = vmatprep.subr.mxu0 0.0
    %531 = vmatpush1.msra.mxu0 0.0
    %532 = vmatprep.subr.mxu0 0.0
    %533 = vmatpush1.msra.mxu0 0.0
    %534 = vmatprep.subr.mxu0 0.0
    %535 = vmatpush1.msra.mxu0 0.0
    %536 = vmatprep.subr.mxu0 0.0
    %537 = vmatpush1.msra.mxu0 0.0
    %538 = vmatprep.subr.mxu0 0.0
    %539 = vmatpush1.msra.mxu0 0.0
    %540 = vmatprep.subr.mxu0 0.0
    %541 = vmatpush1.msra.mxu0 0.0
    %542 = vmatprep.subr.mxu0 0.0
    %543 = vmatpush1.msra.mxu0 0.0
    %544 = vmatprep.subr.mxu0 0.0
    %545 = vmatpush1.msra.mxu0 0.0
    %546 = vmatprep.subr.mxu0 0.0
    %547 = vmatpush1.msra.mxu0 0.0
    %548 = vmatprep.subr.mxu0 0.0
    %549 = vmatpush1.msra.mxu0 0.0
    %550 = vmatprep.subr.mxu0 0.0
    %551 = vmatpush1.msra.mxu0 0.0
    %552 = vmatprep.subr.mxu0 0.0
    %553 = vmatpush1.msra.mxu0 0.0
    %554 = vmatprep.subr.mxu0 0.0
    %555 = vmatpush1.msra.mxu0 0.0
    %556 = vmatprep.subr.mxu0 0.0
    %557 = vmatpush1.msra.mxu0 0.0
    %558 = vmatprep.mubr.f32.mxu0 0.0
    %559 = vmatmul.mubr.f32.gmra.mrb[0].mxu0 %v492
    %v560 = vpop.f32.mrb[0].mxu0
    %v561 = vadd.f32 0.0, %v560
    %v562 = vpop.f32.mrb[0].mxu0
    %563 = vdwg.mxu0
    %v564 = vadd.f32 %v488, %v561
    %v565 = vtanh.pop %v564
    %v566 = vxor.u32 %v564, 2147483648
    %v567 = vmul.f32 %v566, 1.442695
    %v568 = vpow.pop %v567
    %v569 = vadd.f32 %v568, 1.0
    %v570 = vrcp.pop %v569
    %v571 = vmul.f32 1.0, %v570
    %v572 = vsel %vm182, %v565, %v571
    %v573 = vmul.f32 %v572, %v481
    %575 = vrot.lane.b32.xlu0 %v572, 64
    %v576 = vpop.permute.xlu0 %575
    %v578 = vmul.f32 %v572, %v576
    %580 = vrot.lane.b32.xlu0 %v578, 32
    %v581 = vpop.permute.xlu0 %580
    %v583 = vadd.f32 %v573, %v581
    %v584 = vtanh.pop %v583
    %586 = vrot.lane.b32.xlu0 %v584, 64
    %v587 = vpop.permute.xlu0 %586
    %v589 = vmul.f32 %v572, %v587
    %v590 = vld [vmem:[#allocation2 + $0x8] sm:$0x3]
    %592 = vrot.lane.b32.xlu0 %v589, 32
    %v593 = vpop.permute.xlu0 %592
    %v594 = vsel %vm184, %v593, 0
    %596 = vmatprep.subr.mxu0 0.0
    %597 = vmatpush1.msra.mxu0 %v174
    %598 = vmatprep.subr.mxu0 0.0
    %599 = vmatpush1.msra.mxu0 %v175
    %600 = vmatprep.subr.mxu0 0.0
    %601 = vmatpush1.msra.mxu0 %v176
    %602 = vmatprep.subr.mxu0 0.0
    %603 = vmatpush1.msra.mxu0 %v177
    %604 = vmatprep.subr.mxu0 0.0
    %605 = vmatpush1.msra.mxu0 0.0
    %606 = vmatprep.subr.mxu0 0.0
    %607 = vmatpush1.msra.mxu0 0.0
    %608 = vmatprep.subr.mxu0 0.0
    %609 = vmatpush1.msra.mxu0 0.0
    %610 = vmatprep.subr.mxu0 0.0
    %611 = vmatpush1.msra.mxu0 0.0
    %612 = vmatprep.subr.mxu0 0.0
    %613 = vmatpush1.msra.mxu0 0.0
    %614 = vmatprep.subr.mxu0 0.0
    %615 = vmatpush1.msra.mxu0 0.0
    %616 = vmatprep.subr.mxu0 0.0
    %617 = vmatpush1.msra.mxu0 0.0
    %618 = vmatprep.subr.mxu0 0.0
    %619 = vmatpush1.msra.mxu0 0.0
    %620 = vmatprep.subr.mxu0 0.0
    %621 = vmatpush1.msra.mxu0 0.0
    %622 = vmatprep.subr.mxu0 0.0
    %623 = vmatpush1.msra.mxu0 0.0
    %624 = vmatprep.subr.mxu0 0.0
    %625 = vmatpush1.msra.mxu0 0.0
    %626 = vmatprep.subr.mxu0 0.0
    %627 = vmatpush1.msra.mxu0 0.0
    %628 = vmatprep.subr.mxu0 0.0
    %629 = vmatpush1.msra.mxu0 0.0
    %630 = vmatprep.subr.mxu0 0.0
    %631 = vmatpush1.msra.mxu0 0.0
    %632 = vmatprep.subr.mxu0 0.0
    %633 = vmatpush1.msra.mxu0 0.0
    %634 = vmatprep.subr.mxu0 0.0
    %635 = vmatpush1.msra.mxu0 0.0
    %636 = vmatprep.subr.mxu0 0.0
    %637 = vmatpush1.msra.mxu0 0.0
    %638 = vmatprep.subr.mxu0 0.0
    %639 = vmatpush1.msra.mxu0 0.0
    %640 = vmatprep.subr.mxu0 0.0
    %641 = vmatpush1.msra.mxu0 0.0
    %642 = vmatprep.subr.mxu0 0.0
    %643 = vmatpush1.msra.mxu0 0.0
    %644 = vmatprep.subr.mxu0 0.0
    %645 = vmatpush1.msra.mxu0 0.0
    %646 = vmatprep.subr.mxu0 0.0
    %647 = vmatpush1.msra.mxu0 0.0
    %648 = vmatprep.subr.mxu0 0.0
    %649 = vmatpush1.msra.mxu0 0.0
    %650 = vmatprep.subr.mxu0 0.0
    %651 = vmatpush1.msra.mxu0 0.0
    %652 = vmatprep.subr.mxu0 0.0
    %653 = vmatpush1.msra.mxu0 0.0
    %654 = vmatprep.subr.mxu0 0.0
    %655 = vmatpush1.msra.mxu0 0.0
    %656 = vmatprep.subr.mxu0 0.0
    %657 = vmatpush1.msra.mxu0 0.0
    %658 = vmatprep.subr.mxu0 0.0
    %659 = vmatpush1.msra.mxu0 0.0
    %660 = vmatprep.mubr.f32.mxu0 0.0
    %661 = vmatmul.mubr.f32.gmra.mrb[0].mxu0 %v594
    %v662 = vpop.f32.mrb[0].mxu0
    %v663 = vadd.f32 0.0, %v662
    %v664 = vpop.f32.mrb[0].mxu0
    %665 = vdwg.mxu0
    %v666 = vadd.f32 %v590, %v663
    %v667 = vtanh.pop %v666
    %v668 = vxor.u32 %v666, 2147483648
    %v669 = vmul.f32 %v668, 1.442695
    %v670 = vpow.pop %v669
    %v671 = vadd.f32 %v670, 1.0
    %v672 = vrcp.pop %v671
    %v673 = vmul.f32 1.0, %v672
    %v674 = vsel %vm182, %v667, %v673
    %v675 = vmul.f32 %v674, %v583
    %677 = vrot.lane.b32.xlu0 %v674, 64
    %v678 = vpop.permute.xlu0 %677
    %v680 = vmul.f32 %v674, %v678
    %682 = vrot.lane.b32.xlu0 %v680, 32
    %v683 = vpop.permute.xlu0 %682
    %v685 = vadd.f32 %v675, %v683
    %v686 = vtanh.pop %v685
    %688 = vrot.lane.b32.xlu0 %v686, 64
    %v689 = vpop.permute.xlu0 %688
    %v691 = vmul.f32 %v674, %v689
    %v692 = vld [vmem:[#allocation2 + $0xa] sm:$0x3]
    %694 = vrot.lane.b32.xlu0 %v691, 32
    %v695 = vpop.permute.xlu0 %694
    %v696 = vsel %vm184, %v695, 0
    %698 = vmatprep.subr.mxu0 0.0
    %699 = vmatpush1.msra.mxu0 %v174
    %700 = vmatprep.subr.mxu0 0.0
    %701 = vmatpush1.msra.mxu0 %v175
    %702 = vmatprep.subr.mxu0 0.0
    %703 = vmatpush1.msra.mxu0 %v176
    %704 = vmatprep.subr.mxu0 0.0
    %705 = vmatpush1.msra.mxu0 %v177
    %706 = vmatprep.subr.mxu0 0.0
    %707 = vmatpush1.msra.mxu0 0.0
    %708 = vmatprep.subr.mxu0 0.0
    %709 = vmatpush1.msra.mxu0 0.0
    %710 = vmatprep.subr.mxu0 0.0
    %711 = vmatpush1.msra.mxu0 0.0
    %712 = vmatprep.subr.mxu0 0.0
    %713 = vmatpush1.msra.mxu0 0.0
    %714 = vmatprep.subr.mxu0 0.0
    %715 = vmatpush1.msra.mxu0 0.0
    %716 = vmatprep.subr.mxu0 0.0
    %717 = vmatpush1.msra.mxu0 0.0
    %718 = vmatprep.subr.mxu0 0.0
    %719 = vmatpush1.msra.mxu0 0.0
    %720 = vmatprep.subr.mxu0 0.0
    %721 = vmatpush1.msra.mxu0 0.0
    %722 = vmatprep.subr.mxu0 0.0
    %723 = vmatpush1.msra.mxu0 0.0
    %724 = vmatprep.subr.mxu0 0.0
    %725 = vmatpush1.msra.mxu0 0.0
    %726 = vmatprep.subr.mxu0 0.0
    %727 = vmatpush1.msra.mxu0 0.0
    %728 = vmatprep.subr.mxu0 0.0
    %729 = vmatpush1.msra.mxu0 0.0
    %730 = vmatprep.subr.mxu0 0.0
    %731 = vmatpush1.msra.mxu0 0.0
    %732 = vmatprep.subr.mxu0 0.0
    %733 = vmatpush1.msra.mxu0 0.0
    %734 = vmatprep.subr.mxu0 0.0
    %735 = vmatpush1.msra.mxu0 0.0
    %736 = vmatprep.subr.mxu0 0.0
    %737 = vmatpush1.msra.mxu0 0.0
    %738 = vmatprep.subr.mxu0 0.0
    %739 = vmatpush1.msra.mxu0 0.0
    %740 = vmatprep.subr.mxu0 0.0
    %741 = vmatpush1.msra.mxu0 0.0
    %742 = vmatprep.subr.mxu0 0.0
    %743 = vmatpush1.msra.mxu0 0.0
    %744 = vmatprep.subr.mxu0 0.0
    %745 = vmatpush1.msra.mxu0 0.0
    %746 = vmatprep.subr.mxu0 0.0
    %747 = vmatpush1.msra.mxu0 0.0
    %748 = vmatprep.subr.mxu0 0.0
    %749 = vmatpush1.msra.mxu0 0.0
    %750 = vmatprep.subr.mxu0 0.0
    %751 = vmatpush1.msra.mxu0 0.0
    %752 = vmatprep.subr.mxu0 0.0
    %753 = vmatpush1.msra.mxu0 0.0
    %754 = vmatprep.subr.mxu0 0.0
    %755 = vmatpush1.msra.mxu0 0.0
    %756 = vmatprep.subr.mxu0 0.0
    %757 = vmatpush1.msra.mxu0 0.0
    %758 = vmatprep.subr.mxu0 0.0
    %759 = vmatpush1.msra.mxu0 0.0
    %760 = vmatprep.subr.mxu0 0.0
    %761 = vmatpush1.msra.mxu0 0.0
    %762 = vmatprep.mubr.f32.mxu0 0.0
    %763 = vmatmul.mubr.f32.gmra.mrb[0].mxu0 %v696
    %v764 = vpop.f32.mrb[0].mxu0
    %v765 = vadd.f32 0.0, %v764
    %v766 = vpop.f32.mrb[0].mxu0
    %767 = vdwg.mxu0
    %v768 = vadd.f32 %v692, %v765
    %v769 = vtanh.pop %v768
    %v770 = vxor.u32 %v768, 2147483648
    %v771 = vmul.f32 %v770, 1.442695
    %v772 = vpow.pop %v771
    %v773 = vadd.f32 %v772, 1.0
    %v774 = vrcp.pop %v773
    %v775 = vmul.f32 1.0, %v774
    %v776 = vsel %vm182, %v769, %v775
    %v777 = vmul.f32 %v776, %v685
    %779 = vrot.lane.b32.xlu0 %v776, 64
    %v780 = vpop.permute.xlu0 %779
    %v782 = vmul.f32 %v776, %v780
    %784 = vrot.lane.b32.xlu0 %v782, 32
    %v785 = vpop.permute.xlu0 %784
    %v787 = vadd.f32 %v777, %v785
    %v788 = vtanh.pop %v787
    %790 = vrot.lane.b32.xlu0 %v788, 64
    %v791 = vpop.permute.xlu0 %790
    %v793 = vmul.f32 %v776, %v791
    %v794 = vld [vmem:[#allocation2 + $0xc] sm:$0x3]
    %796 = vrot.lane.b32.xlu0 %v793, 32
    %v797 = vpop.permute.xlu0 %796
    %v798 = vsel %vm184, %v797, 0
    %800 = vmatprep.subr.mxu0 0.0
    %801 = vmatpush1.msra.mxu0 %v174
    %802 = vmatprep.subr.mxu0 0.0
    %803 = vmatpush1.msra.mxu0 %v175
    %804 = vmatprep.subr.mxu0 0.0
    %805 = vmatpush1.msra.mxu0 %v176
    %806 = vmatprep.subr.mxu0 0.0
    %807 = vmatpush1.msra.mxu0 %v177
    %808 = vmatprep.subr.mxu0 0.0
    %809 = vmatpush1.msra.mxu0 0.0
    %810 = vmatprep.subr.mxu0 0.0
    %811 = vmatpush1.msra.mxu0 0.0
    %812 = vmatprep.subr.mxu0 0.0
    %813 = vmatpush1.msra.mxu0 0.0
    %814 = vmatprep.subr.mxu0 0.0
    %815 = vmatpush1.msra.mxu0 0.0
    %816 = vmatprep.subr.mxu0 0.0
    %817 = vmatpush1.msra.mxu0 0.0
    %818 = vmatprep.subr.mxu0 0.0
    %819 = vmatpush1.msra.mxu0 0.0
    %820 = vmatprep.subr.mxu0 0.0
    %821 = vmatpush1.msra.mxu0 0.0
    %822 = vmatprep.subr.mxu0 0.0
    %823 = vmatpush1.msra.mxu0 0.0
    %824 = vmatprep.subr.mxu0 0.0
    %825 = vmatpush1.msra.mxu0 0.0
    %826 = vmatprep.subr.mxu0 0.0
    %827 = vmatpush1.msra.mxu0 0.0
    %828 = vmatprep.subr.mxu0 0.0
    %829 = vmatpush1.msra.mxu0 0.0
    %830 = vmatprep.subr.mxu0 0.0
    %831 = vmatpush1.msra.mxu0 0.0
    %832 = vmatprep.subr.mxu0 0.0
    %833 = vmatpush1.msra.mxu0 0.0
    %834 = vmatprep.subr.mxu0 0.0
    %835 = vmatpush1.msra.mxu0 0.0
    %836 = vmatprep.subr.mxu0 0.0
    %837 = vmatpush1.msra.mxu0 0.0
    %838 = vmatprep.subr.mxu0 0.0
    %839 = vmatpush1.msra.mxu0 0.0
    %840 = vmatprep.subr.mxu0 0.0
    %841 = vmatpush1.msra.mxu0 0.0
    %842 = vmatprep.subr.mxu0 0.0
    %843 = vmatpush1.msra.mxu0 0.0
    %844 = vmatprep.subr.mxu0 0.0
    %845 = vmatpush1.msra.mxu0 0.0
    %846 = vmatprep.subr.mxu0 0.0
    %847 = vmatpush1.msra.mxu0 0.0
    %848 = vmatprep.subr.mxu0 0.0
    %849 = vmatpush1.msra.mxu0 0.0
    %850 = vmatprep.subr.mxu0 0.0
    %851 = vmatpush1.msra.mxu0 0.0
    %852 = vmatprep.subr.mxu0 0.0
    %853 = vmatpush1.msra.mxu0 0.0
    %854 = vmatprep.subr.mxu0 0.0
    %855 = vmatpush1.msra.mxu0 0.0
    %856 = vmatprep.subr.mxu0 0.0
    %857 = vmatpush1.msra.mxu0 0.0
    %858 = vmatprep.subr.mxu0 0.0
    %859 = vmatpush1.msra.mxu0 0.0
    %860 = vmatprep.subr.mxu0 0.0
    %861 = vmatpush1.msra.mxu0 0.0
    %862 = vmatprep.subr.mxu0 0.0
    %863 = vmatpush1.msra.mxu0 0.0
    %864 = vmatprep.mubr.f32.mxu0 0.0
    %865 = vmatmul.mubr.f32.gmra.mrb[0].mxu0 %v798
    %v866 = vpop.f32.mrb[0].mxu0
    %v867 = vadd.f32 0.0, %v866
    %v868 = vpop.f32.mrb[0].mxu0
    %869 = vdwg.mxu0
    %v870 = vadd.f32 %v794, %v867
    %v871 = vtanh.pop %v870
    %v872 = vxor.u32 %v870, 2147483648
    %v873 = vmul.f32 %v872, 1.442695
    %v874 = vpow.pop %v873
    %v875 = vadd.f32 %v874, 1.0
    %v876 = vrcp.pop %v875
    %v877 = vmul.f32 1.0, %v876
    %v878 = vsel %vm182, %v871, %v877
    %v879 = vmul.f32 %v878, %v787
    %881 = vrot.lane.b32.xlu0 %v878, 64
    %v882 = vpop.permute.xlu0 %881
    %v884 = vmul.f32 %v878, %v882
    %886 = vrot.lane.b32.xlu0 %v884, 32
    %v887 = vpop.permute.xlu0 %886
    %v889 = vadd.f32 %v879, %v887
    %v890 = vtanh.pop %v889
    %892 = vrot.lane.b32.xlu0 %v890, 64
    %v893 = vpop.permute.xlu0 %892
    %v895 = vmul.f32 %v878, %v893
    %v896 = vld [vmem:[#allocation2 + $0xe] sm:$0x3]
    %898 = vrot.lane.b32.xlu0 %v895, 32
    %v899 = vpop.permute.xlu0 %898
    %v900 = vsel %vm184, %v899, 0
    %902 = vmatprep.subr.mxu0 0.0
    %903 = vmatpush1.msra.mxu0 %v174
    %904 = vmatprep.subr.mxu0 0.0
    %905 = vmatpush1.msra.mxu0 %v175
    %906 = vmatprep.subr.mxu0 0.0
    %907 = vmatpush1.msra.mxu0 %v176
    %908 = vmatprep.subr.mxu0 0.0
    %909 = vmatpush1.msra.mxu0 %v177
    %910 = vmatprep.subr.mxu0 0.0
    %911 = vmatpush1.msra.mxu0 0.0
    %912 = vmatprep.subr.mxu0 0.0
    %913 = vmatpush1.msra.mxu0 0.0
    %914 = vmatprep.subr.mxu0 0.0
    %915 = vmatpush1.msra.mxu0 0.0
    %916 = vmatprep.subr.mxu0 0.0
    %917 = vmatpush1.msra.mxu0 0.0
    %918 = vmatprep.subr.mxu0 0.0
    %919 = vmatpush1.msra.mxu0 0.0
    %920 = vmatprep.subr.mxu0 0.0
    %921 = vmatpush1.msra.mxu0 0.0
    %922 = vmatprep.subr.mxu0 0.0
    %923 = vmatpush1.msra.mxu0 0.0
    %924 = vmatprep.subr.mxu0 0.0
    %925 = vmatpush1.msra.mxu0 0.0
    %926 = vmatprep.subr.mxu0 0.0
    %927 = vmatpush1.msra.mxu0 0.0
    %928 = vmatprep.subr.mxu0 0.0
    %929 = vmatpush1.msra.mxu0 0.0
    %930 = vmatprep.subr.mxu0 0.0
    %931 = vmatpush1.msra.mxu0 0.0
    %932 = vmatprep.subr.mxu0 0.0
    %933 = vmatpush1.msra.mxu0 0.0
    %934 = vmatprep.subr.mxu0 0.0
    %935 = vmatpush1.msra.mxu0 0.0
    %936 = vmatprep.subr.mxu0 0.0
    %937 = vmatpush1.msra.mxu0 0.0
    %938 = vmatprep.subr.mxu0 0.0
    %939 = vmatpush1.msra.mxu0 0.0
    %940 = vmatprep.subr.mxu0 0.0
    %941 = vmatpush1.msra.mxu0 0.0
    %942 = vmatprep.subr.mxu0 0.0
    %943 = vmatpush1.msra.mxu0 0.0
    %944 = vmatprep.subr.mxu0 0.0
    %945 = vmatpush1.msra.mxu0 0.0
    %946 = vmatprep.subr.mxu0 0.0
    %947 = vmatpush1.msra.mxu0 0.0
    %948 = vmatprep.subr.mxu0 0.0
    %949 = vmatpush1.msra.mxu0 0.0
    %950 = vmatprep.subr.mxu0 0.0
    %951 = vmatpush1.msra.mxu0 0.0
    %952 = vmatprep.subr.mxu0 0.0
    %953 = vmatpush1.msra.mxu0 0.0
    %954 = vmatprep.subr.mxu0 0.0
    %955 = vmatpush1.msra.mxu0 0.0
    %956 = vmatprep.subr.mxu0 0.0
    %957 = vmatpush1.msra.mxu0 0.0
    %958 = vmatprep.subr.mxu0 0.0
    %959 = vmatpush1.msra.mxu0 0.0
    %960 = vmatprep.subr.mxu0 0.0
    %961 = vmatpush1.msra.mxu0 0.0
    %962 = vmatprep.subr.mxu0 0.0
    %963 = vmatpush1.msra.mxu0 0.0
    %964 = vmatprep.subr.mxu0 0.0
    %965 = vmatpush1.msra.mxu0 0.0
    %966 = vmatprep.mubr.f32.mxu0 0.0
    %967 = vmatmul.mubr.f32.gmra.mrb[0].mxu0 %v900
    %v968 = vpop.f32.mrb[0].mxu0
    %v969 = vadd.f32 0.0, %v968
    %v970 = vpop.f32.mrb[0].mxu0
    %971 = vdwg.mxu0
    %v972 = vadd.f32 %v896, %v969
    %v973 = vtanh.pop %v972
    %v974 = vxor.u32 %v972, 2147483648
    %v975 = vmul.f32 %v974, 1.442695
    %v976 = vpow.pop %v975
    %v977 = vadd.f32 %v976, 1.0
    %v978 = vrcp.pop %v977
    %v979 = vmul.f32 1.0, %v978
    %v980 = vsel %vm182, %v973, %v979
    %v981 = vmul.f32 %v980, %v889
    %983 = vrot.lane.b32.xlu0 %v980, 64
    %v984 = vpop.permute.xlu0 %983
    %v986 = vmul.f32 %v980, %v984
    %988 = vrot.lane.b32.xlu0 %v986, 32
    %v989 = vpop.permute.xlu0 %988
    %v991 = vadd.f32 %v981, %v989
    %v992 = vtanh.pop %v991
    %994 = vrot.lane.b32.xlu0 %v992, 64
    %v995 = vpop.permute.xlu0 %994
    %v997 = vmul.f32 %v980, %v995
    %v998 = vld [vmem:[#allocation9] sm:$0xff]
    %v999 = vld [vmem:[#allocation9 + $0x8] sm:$0xff]
    %v1000 = vld [vmem:[#allocation9 + $0x10] sm:$0xff]
    %v1001 = vld [vmem:[#allocation9 + $0x18] sm:$0xff]
    %v1002 = vld [vmem:[%s5] sm:$0x1]
    %v1004 = vlaneseq
    %v1005 = vshrl.u32 %v1004, 7
    %v1006 = vsub.s32 0, %v1005
    %v1007 = vrot.slane %v1002, %v1006
    %1010 = vrot.lane.b32.xlu0 %v997, 32
    %v1011 = vpop.permute.xlu0 %1010
    %v1012 = vsel %vm184, %v1011, 0
    %1014 = vmatprep.subr.mxu0 0.0
    %1015 = vmatpush1.msra.mxu0 %v998
    %1016 = vmatprep.subr.mxu0 0.0
    %1017 = vmatpush1.msra.mxu0 %v999
    %1018 = vmatprep.subr.mxu0 0.0
    %1019 = vmatpush1.msra.mxu0 %v1000
    %1020 = vmatprep.subr.mxu0 0.0
    %1021 = vmatpush1.msra.mxu0 %v1001
    %1022 = vmatprep.subr.mxu0 0.0
    %1023 = vmatpush1.msra.mxu0 0.0
    %1024 = vmatprep.subr.mxu0 0.0
    %1025 = vmatpush1.msra.mxu0 0.0
    %1026 = vmatprep.subr.mxu0 0.0
    %1027 = vmatpush1.msra.mxu0 0.0
    %1028 = vmatprep.subr.mxu0 0.0
    %1029 = vmatpush1.msra.mxu0 0.0
    %1030 = vmatprep.subr.mxu0 0.0
    %1031 = vmatpush1.msra.mxu0 0.0
    %1032 = vmatprep.subr.mxu0 0.0
    %1033 = vmatpush1.msra.mxu0 0.0
    %1034 = vmatprep.subr.mxu0 0.0
    %1035 = vmatpush1.msra.mxu0 0.0
    %1036 = vmatprep.subr.mxu0 0.0
    %1037 = vmatpush1.msra.mxu0 0.0
    %1038 = vmatprep.subr.mxu0 0.0
    %1039 = vmatpush1.msra.mxu0 0.0
    %1040 = vmatprep.subr.mxu0 0.0
    %1041 = vmatpush1.msra.mxu0 0.0
    %1042 = vmatprep.subr.mxu0 0.0
    %1043 = vmatpush1.msra.mxu0 0.0
    %1044 = vmatprep.subr.mxu0 0.0
    %1045 = vmatpush1.msra.mxu0 0.0
    %1046 = vmatprep.subr.mxu0 0.0
    %1047 = vmatpush1.msra.mxu0 0.0
    %1048 = vmatprep.subr.mxu0 0.0
    %1049 = vmatpush1.msra.mxu0 0.0
    %1050 = vmatprep.subr.mxu0 0.0
    %1051 = vmatpush1.msra.mxu0 0.0
    %1052 = vmatprep.subr.mxu0 0.0
    %1053 = vmatpush1.msra.mxu0 0.0
    %1054 = vmatprep.subr.mxu0 0.0
    %1055 = vmatpush1.msra.mxu0 0.0
    %1056 = vmatprep.subr.mxu0 0.0
    %1057 = vmatpush1.msra.mxu0 0.0
    %1058 = vmatprep.subr.mxu0 0.0
    %1059 = vmatpush1.msra.mxu0 0.0
    %1060 = vmatprep.subr.mxu0 0.0
    %1061 = vmatpush1.msra.mxu0 0.0
    %1062 = vmatprep.subr.mxu0 0.0
    %1063 = vmatpush1.msra.mxu0 0.0
    %1064 = vmatprep.subr.mxu0 0.0
    %1065 = vmatpush1.msra.mxu0 0.0
    %1066 = vmatprep.subr.mxu0 0.0
    %1067 = vmatpush1.msra.mxu0 0.0
    %1068 = vmatprep.subr.mxu0 0.0
    %1069 = vmatpush1.msra.mxu0 0.0
    %1070 = vmatprep.subr.mxu0 0.0
    %1071 = vmatpush1.msra.mxu0 0.0
    %1072 = vmatprep.subr.mxu0 0.0
    %1073 = vmatpush1.msra.mxu0 0.0
    %1074 = vmatprep.subr.mxu0 0.0
    %1075 = vmatpush1.msra.mxu0 0.0
    %1076 = vmatprep.subr.mxu0 0.0
    %1077 = vmatpush1.msra.mxu0 0.0
    %1078 = vmatprep.mubr.f32.mxu0 0.0
    %1079 = vmatmul.mubr.f32.gmra.mrb[0].mxu0 %v1012
    %v1080 = vpop.f32.mrb[0].mxu0
    %v1081 = vadd.f32 %v1007, %v1080
    %v1082 = vpop.f32.mrb[0].mxu0
    %1083 = vdwg.mxu0
    %1084 = vst [vmem:[#allocation11] sm:$0x3] %v1081
    // Predicated region
    $region42: #{tpu_custom_call.1} parent=1 // pred_check
      _
    $region43: #{tpu_custom_call.1} parent=1 // pred_check_branch
      %1086 = sbr.rel (0) target = $region45
    $region44: #{tpu_custom_call.1} parent=1 // pred_region
      %s1088 = ssub.s32 32, 32
      %1089 = vsyncadd [#allocation5], %s1088
      %s1091 = sshll.u32 [#allocation11], 4
      %s1092 = int_to_ptr.vmem [resolvable:$true] %s1091
      %1094 = dma.vmem_to_hbm [thread:$0]  %s1092, 32, %s6, [#allocation5]
    $region45: #{tpu_custom_call.1} parent=1 // pred_fallthru
      _
    // Predicated region
    $region46: #{tpu_custom_call.1} parent=1 // pred_check
      _
    $region47: #{tpu_custom_call.1} parent=1 // pred_check_branch
      %1096 = sbr.rel (0) target = $region49
    $region48: #{tpu_custom_call.1} parent=1 // pred_region
      %1097 = dma.done [#allocation5], 32
    $region49: #{tpu_custom_call.1} parent=1 // pred_fallthru
      _
    %1098 = vsyncpa [#allocation4], 1
    %1099 = vsyncpa [#allocation7], 1
    %1100 = vsyncpa [#allocation10], 1
    %1101 = vsyncpa [#allocation5], 1

</llo_original>
